<compile_context>
chip_gen: v7x
topology: tpu7x:2x2x1
jax: 0.10.0
libtpu: 0.0.40
codegen_flags: <defaults>
</compile_context>

<pallas_src>
import functools

import jax
import jax.numpy as jnp
import numpy as np
from jax.experimental import pallas as pl
from jax.experimental.pallas import tpu as pltpu


def _round_up(x, m):
    return (x + m - 1) // m * m


def _critic_kernel(state_ref, action_ref, p_ref, b3_ref, o_ref, *,
                   S, A, H, off_w1a, off_w2, off_b):
    """Whole-MLP hot path: 2 MXU matmuls + split first layer + VPU/XLU last layer."""
    s = state_ref[...]                      # (B, S)
    a = action_ref[...]                     # (B, A)

    # Static slices of the packed parameter slab (zero-cost ref views).
    w1s = p_ref[0:S, :]                     # (S, H)  first-layer weight, state part
    w1a = p_ref[off_w1a:off_w1a + A, :]     # (A, H)  first-layer weight, action part
    w2 = p_ref[off_w2:off_w2 + H, :]        # (H, H)
    b1 = p_ref[off_b + 0:off_b + 1, :]      # (1, H)
    b2 = p_ref[off_b + 1:off_b + 2, :]      # (1, H)
    w3r = p_ref[off_b + 2:off_b + 3, :]     # (1, H)  W3 stored as a row

    # Layer 1: concat(state, action) @ W1  ==  state @ W1[:S] + action @ W1[S:]
    h1 = jnp.dot(s, w1s, preferred_element_type=jnp.float32)
    h1 = h1 + jnp.dot(a, w1a, preferred_element_type=jnp.float32)
    h1 = jnp.maximum(h1 + b1, 0.0)

    # Layer 2
    h2 = jnp.dot(h1, w2, preferred_element_type=jnp.float32)
    h2 = jnp.maximum(h2 + b2, 0.0)

    # Layer 3 (out_features == 1): keep it off the MXU — VPU mul + XLU lane reduce.
    q = jnp.sum(h2 * w3r, axis=-1, keepdims=True) + b3_ref[0, 0]
    o_ref[...] = q.astype(o_ref.dtype)


def pack_critic_params(params, state_size, action_size, hidden_size):
    """One-time host-side packing of all parameters into a single VMEM slab.

    Row layout (each segment starts at an 8-aligned sublane offset):
      [0            : S         )  W1 rows for state features   (S, H)
      [off_w1a      : off_w1a+A )  W1 rows for action features  (A, H)
      [off_w2       : off_w2+H  )  W2                            (H, H)
      row off_b                     b1
      row off_b + 1                 b2
      row off_b + 2                 W3 as a row (H,)
    b3 is returned separately as a (1, 1) SMEM scalar.
    """
    w1, b1, w2, b2, w3, b3 = params
    S, A, H = state_size, action_size, hidden_size

    off_w1a = _round_up(S, 8)
    off_w2 = _round_up(off_w1a + A, 8)
    off_b = _round_up(off_w2 + H, 8)
    P = _round_up(off_b + 3, 8)

    slab = np.zeros((P, H), np.float32)
    slab[0:S, :] = np.asarray(w1)[0:S, :]
    slab[off_w1a:off_w1a + A, :] = np.asarray(w1)[S:S + A, :]
    slab[off_w2:off_w2 + H, :] = np.asarray(w2)
    slab[off_b + 0, :] = np.asarray(b1).reshape(-1)
    slab[off_b + 1, :] = np.asarray(b2).reshape(-1)
    slab[off_b + 2, :] = np.asarray(w3).reshape(-1)

    b3_s = np.asarray(b3, np.float32).reshape(1, 1)

    layout = dict(S=S, A=A, H=H, off_w1a=off_w1a, off_w2=off_w2, off_b=off_b)
    return jnp.asarray(slab), jnp.asarray(b3_s), layout


def critic_forward(state, action, slab, b3, layout):
    """Single grid-less pallas_call: 4 inputs (state, action, packed params, b3)."""
    B = state.shape[0]
    S, A, H = layout["S"], layout["A"], layout["H"]

    kernel = functools.partial(_critic_kernel, **layout)

    flops = 2 * B * (S * H + A * H + H * H + H)
    bytes_accessed = 4 * (B * S + B * A + int(np.prod(slab.shape)) + 1 + B)

    vmem = lambda: pl.BlockSpec(memory_space=pltpu.MemorySpace.VMEM)

    return pl.pallas_call(
        kernel,
        out_shape=jax.ShapeDtypeStruct((B, 1), jnp.float32),
        in_specs=[
            vmem(),                                               # state  (B, S)
            vmem(),                                               # action (B, A)
            vmem(),                                               # packed params (P, H)
            pl.BlockSpec(memory_space=pltpu.MemorySpace.SMEM),    # b3 scalar (1, 1)
        ],
        out_specs=vmem(),
        cost_estimate=pl.CostEstimate(
            flops=flops, transcendentals=0, bytes_accessed=bytes_accessed),
    )(state, action, slab, b3)


def init_critic_params(key, state_size, action_size, hidden_size=32):
    """Deterministic init mirroring Critic.reset_parameters() semantics.

    hidden_init uses weight.size()[0] == out_features as "fan_in" (PyTorch quirk
    preserved).  Biases keep nn.Linear's default U(-1/sqrt(in), 1/sqrt(in)).
    Weights are stored transposed: (in_features, out_features).
    """
    in1 = state_size + action_size
    ks = jax.random.split(key, 6)

    lim1 = 1.0 / np.sqrt(hidden_size)            # size()[0] of (hidden, in1)
    lim2 = 1.0 / np.sqrt(hidden_size)
    lim3 = 0.003

    w1 = jax.random.uniform(ks[0], (in1, hidden_size), jnp.float32, -lim1, lim1)
    b1 = jax.random.uniform(ks[1], (1, hidden_size), jnp.float32,
                            -1.0 / np.sqrt(in1), 1.0 / np.sqrt(in1))
    w2 = jax.random.uniform(ks[2], (hidden_size, hidden_size), jnp.float32, -lim2, lim2)
    b2 = jax.random.uniform(ks[3], (1, hidden_size), jnp.float32,
                            -1.0 / np.sqrt(hidden_size), 1.0 / np.sqrt(hidden_size))
    w3 = jax.random.uniform(ks[4], (hidden_size, 1), jnp.float32, -lim3, lim3)
    b3 = jax.random.uniform(ks[5], (1, 1), jnp.float32,
                            -1.0 / np.sqrt(hidden_size), 1.0 / np.sqrt(hidden_size))
    return (w1, b1, w2, b2, w3, b3)


def critic_reference(state, action, params):
    """Pure-JAX reference for correctness check."""
    w1, b1, w2, b2, w3, b3 = params
    x = jnp.concatenate([state, action], axis=-1)
    h1 = jnp.maximum(x @ w1 + b1, 0.0)
    h2 = jnp.maximum(h1 @ w2 + b2, 0.0)
    return h2 @ w3 + b3


if __name__ == "__main__":
    state_size, action_size, hidden_size, batch = 17, 7, 32, 8

    key = jax.random.PRNGKey(0)
    k_params, k_state, k_action = jax.random.split(key, 3)

    params = init_critic_params(k_params, state_size, action_size, hidden_size)
    slab, b3_scalar, layout = pack_critic_params(
        params, state_size, action_size, hidden_size)

    state = jax.random.normal(k_state, (batch, state_size), jnp.float32)
    action = jax.random.normal(k_action, (batch, action_size), jnp.float32)

    q = critic_forward(state, action, slab, b3_scalar, layout)
    q = jax.block_until_ready(q)

    q_ref = critic_reference(state, action, params)
    np.testing.assert_allclose(np.asarray(q), np.asarray(q_ref), rtol=1e-5, atol=1e-5)
    assert q.shape == (batch, 1)

    print("KERNEL_OK")
</pallas_src>

<mosaic_0001>
module attributes {stable_mosaic.version = 11 : i64} {
  func.func @_critic_kernel(%arg0: memref<8x17xf32, #tpu.memory_space<vmem>>, %arg1: memref<8x7xf32, #tpu.memory_space<vmem>>, %arg2: memref<72x32xf32, #tpu.memory_space<vmem>>, %arg3: memref<1x1xf32, #tpu.memory_space<smem>>, %arg4: memref<8x1xf32, #tpu.memory_space<vmem>>) attributes {dimension_semantics = [], scalar_prefetch = 0 : i64, scratch_operands = 0 : i64, tpu.core_type = #tpu.core_type<tc>} {
    %c0 = arith.constant 0 : index
    %c0_0 = arith.constant 0 : index
    %0 = vector.load %arg0[%c0, %c0_0] : memref<8x17xf32, #tpu.memory_space<vmem>>, vector<8x17xf32>
    %c0_1 = arith.constant 0 : index
    %c0_2 = arith.constant 0 : index
    %1 = vector.load %arg1[%c0_1, %c0_2] : memref<8x7xf32, #tpu.memory_space<vmem>>, vector<8x7xf32>
    %c0_3 = arith.constant 0 : index
    %c0_4 = arith.constant 0 : index
    %2 = vector.load %arg2[%c0_3, %c0_4] : memref<72x32xf32, #tpu.memory_space<vmem>>, vector<17x32xf32>
    %c24 = arith.constant 24 : index
    %c0_5 = arith.constant 0 : index
    %3 = vector.load %arg2[%c24, %c0_5] : memref<72x32xf32, #tpu.memory_space<vmem>>, vector<7x32xf32>
    %c32 = arith.constant 32 : index
    %c0_6 = arith.constant 0 : index
    %4 = vector.load %arg2[%c32, %c0_6] : memref<72x32xf32, #tpu.memory_space<vmem>>, vector<32x32xf32>
    %c64 = arith.constant 64 : index
    %c0_7 = arith.constant 0 : index
    %5 = vector.load %arg2[%c64, %c0_7] : memref<72x32xf32, #tpu.memory_space<vmem>>, vector<1x32xf32>
    %c65 = arith.constant 65 : index
    %c0_8 = arith.constant 0 : index
    %6 = vector.load %arg2[%c65, %c0_8] : memref<72x32xf32, #tpu.memory_space<vmem>>, vector<1x32xf32>
    %c66 = arith.constant 66 : index
    %c0_9 = arith.constant 0 : index
    %7 = vector.load %arg2[%c66, %c0_9] : memref<72x32xf32, #tpu.memory_space<vmem>>, vector<1x32xf32>
    %cst = arith.constant dense<0.000000e+00> : vector<8x32xf32>
    %8 = tpu.matmul %0, %2, %cst {dimension_numbers = #tpu.dot_dimension_numbers<[1], [0], [0], [1], [0, 0, 1, 1], [], []>} : vector<8x17xf32>, vector<17x32xf32>, vector<8x32xf32> -> vector<8x32xf32>
    %cst_10 = arith.constant dense<0.000000e+00> : vector<8x32xf32>
    %9 = tpu.matmul %1, %3, %cst_10 {dimension_numbers = #tpu.dot_dimension_numbers<[1], [0], [0], [1], [0, 0, 1, 1], [], []>} : vector<8x7xf32>, vector<7x32xf32>, vector<8x32xf32> -> vector<8x32xf32>
    %10 = arith.addf %8, %9 : vector<8x32xf32>
    %11 = vector.broadcast %5 : vector<1x32xf32> to vector<8x32xf32>
    %12 = arith.addf %10, %11 : vector<8x32xf32>
    %cst_11 = arith.constant 0.000000e+00 : f32
    %13 = vector.broadcast %cst_11 : f32 to vector<8x32xf32>
    %14 = arith.maximumf %12, %13 : vector<8x32xf32>
    %cst_12 = arith.constant dense<0.000000e+00> : vector<8x32xf32>
    %15 = tpu.matmul %14, %4, %cst_12 {dimension_numbers = #tpu.dot_dimension_numbers<[1], [0], [0], [1], [0, 0, 1, 1], [], []>} : vector<8x32xf32>, vector<32x32xf32>, vector<8x32xf32> -> vector<8x32xf32>
    %16 = vector.broadcast %6 : vector<1x32xf32> to vector<8x32xf32>
    %17 = arith.addf %15, %16 : vector<8x32xf32>
    %cst_13 = arith.constant 0.000000e+00 : f32
    %18 = vector.broadcast %cst_13 : f32 to vector<8x32xf32>
    %19 = arith.maximumf %17, %18 : vector<8x32xf32>
    %20 = vector.broadcast %7 : vector<1x32xf32> to vector<8x32xf32>
    %21 = arith.mulf %19, %20 : vector<8x32xf32>
    %cst_14 = arith.constant dense<0.000000e+00> : vector<8xf32>
    %22 = vector.multi_reduction <add>, %21, %cst_14 [1] : vector<8x32xf32> to vector<8xf32>
    %23 = vector.shape_cast %22 : vector<8xf32> to vector<8x1xf32>
    %c0_15 = arith.constant 0 : index
    %c0_16 = arith.constant 0 : index
    %24 = memref.load %arg3[%c0_15, %c0_16] : memref<1x1xf32, #tpu.memory_space<smem>>
    %25 = vector.broadcast %24 : f32 to vector<8x1xf32>
    %26 = arith.addf %23, %25 : vector<8x1xf32>
    %c0_17 = arith.constant 0 : index
    %c0_18 = arith.constant 0 : index
    %27 = vector.load %arg4[%c0_17, %c0_18] : memref<8x1xf32, #tpu.memory_space<vmem>>, vector<8x1xf32>
    tpu.vector_store %arg4[%c0_17, %c0_18], %26 {strides = array<i32>} : memref<8x1xf32, #tpu.memory_space<vmem>>, vector<8x1xf32>,
    return
  }
}

</mosaic_0001>

<llo_original>
// kernel: tpu_custom_call.1
$region0: #{tpu_custom_call.1}
  #allocation0 [shape = 'u32[]', space=smem, size = 0x4, offset = 0x4, fixed_abs, tag = 'smem constant byte address 0x4 - core index']
  #allocation1 [shape = 'u32[144,128]{1,0:T(1,128)}', space=vmem, size = 0x12000, scoped, tag = 'internal scratch']
  #allocation2 [shape = 'f32[1,1]{1,0:T(1,128)S(6)}', space=smem, size = 0x200, scoped, tag = 'scoped memory for tpu_custom_call.1']
  %s0 = inlined_call_operand.vmem [shape: f32[8,17], index: 0, kind: input, shape index: {}]
  %s1 = inlined_call_operand.vmem [shape: f32[8,7], index: 1, kind: input, shape index: {}]
  %s2 = inlined_call_operand.vmem [shape: f32[72,32], index: 2, kind: input, shape index: {}]
  %s3 = inlined_call_operand.<no memory space> [shape: f32[1,1], index: 3, kind: input, shape index: {}]
  %s4 = inlined_call_operand.vmem [shape: f32[8,1], index: 4, kind: output, shape index: {}]
  %s5 = sld [smem:[#allocation0]]
  $region26: #{tpu_custom_call.1} parent=0
    _
  %s7 = ssub.s32 1, %s5
  %s8 = scalar_select 0, %s7, %s5
  %9 = sst [smem:[#allocation2]] %s3
  // Predicated region
  $region2: #{tpu_custom_call.1} parent=0 // pred_check
    _
  $region3: #{tpu_custom_call.1} parent=0 // pred_check_branch
    %11 = sbr.rel (0) target = $region5
  $region4: #{tpu_custom_call.1} parent=0 // pred_region
    _
  $region5: #{tpu_custom_call.1} parent=0 // pred_fallthru
    _
  // Predicated region
  $region6: #{tpu_custom_call.1} parent=0 // pred_check
    _
  $region7: #{tpu_custom_call.1} parent=0 // pred_check_branch
    %13 = sbr.rel (0) target = $region9
  $region8: #{tpu_custom_call.1} parent=0 // pred_region
    _
  $region9: #{tpu_custom_call.1} parent=0 // pred_fallthru
    _
  // Predicated region
  $region10: #{tpu_custom_call.1} parent=0 // pred_check
    _
  $region11: #{tpu_custom_call.1} parent=0 // pred_check_branch
    %15 = sbr.rel (0) target = $region13
  $region12: #{tpu_custom_call.1} parent=0 // pred_region
    _
  $region13: #{tpu_custom_call.1} parent=0 // pred_fallthru
    _
  // Predicated region
  $region14: #{tpu_custom_call.1} parent=0 // pred_check
    _
  $region15: #{tpu_custom_call.1} parent=0 // pred_check_branch
    %17 = sbr.rel (0) target = $region17
  $region16: #{tpu_custom_call.1} parent=0 // pred_region
    _
  $region17: #{tpu_custom_call.1} parent=0 // pred_fallthru
    _
  %v18 = vld [vmem:[%s0] sm:$0xff]
  %v19 = vld [vmem:[%s1] sm:$0xff]
  %v20 = vld [vmem:[%s2] sm:$0xff]
  %v21 = vld [vmem:[%s2 + $0x8] sm:$0xff]
  %v22 = vld [vmem:[%s2 + $0x10] sm:$0x1]
  %v23 = vld [vmem:[%s2 + $0x18] sm:$0x7f]
  %v24 = vld [vmem:[%s2 + $0x20] sm:$0xff]
  %v25 = vld [vmem:[%s2 + $0x28] sm:$0xff]
  %v26 = vld [vmem:[%s2 + $0x30] sm:$0xff]
  %v27 = vld [vmem:[%s2 + $0x38] sm:$0xff]
  %v28 = vld [vmem:[%s2 + $0x40] sm:$0x1]
  %v29 = vld [vmem:[%s2 + $0x41] sm:$0x1]
  %v30 = vld [vmem:[%s2 + $0x42] sm:$0x1]
  %vm31 = vcmask 56320
  %v33 = vsel %vm31, %v19, 0
  %vm35 = vcmask 1046528
  %v37 = vsel %vm35, %v23, 0
  %39 = vmatprep.subr.mxu0 0.0
  %40 = vmatpush1.msra.mxu0 %v37
  %41 = vmatprep.subr.mxu0 0.0
  %42 = vmatpush1.msra.mxu0 0.0
  %43 = vmatprep.subr.mxu0 0.0
  %44 = vmatpush1.msra.mxu0 0.0
  %45 = vmatprep.subr.mxu0 0.0
  %46 = vmatpush1.msra.mxu0 0.0
  %47 = vmatprep.subr.mxu0 0.0
  %48 = vmatpush1.msra.mxu0 0.0
  %49 = vmatprep.subr.mxu0 0.0
  %50 = vmatpush1.msra.mxu0 0.0
  %51 = vmatprep.subr.mxu0 0.0
  %52 = vmatpush1.msra.mxu0 0.0
  %53 = vmatprep.subr.mxu0 0.0
  %54 = vmatpush1.msra.mxu0 0.0
  %55 = vmatprep.subr.mxu0 0.0
  %56 = vmatpush1.msra.mxu0 0.0
  %57 = vmatprep.subr.mxu0 0.0
  %58 = vmatpush1.msra.mxu0 0.0
  %59 = vmatprep.subr.mxu0 0.0
  %60 = vmatpush1.msra.mxu0 0.0
  %61 = vmatprep.subr.mxu0 0.0
  %62 = vmatpush1.msra.mxu0 0.0
  %63 = vmatprep.subr.mxu0 0.0
  %64 = vmatpush1.msra.mxu0 0.0
  %65 = vmatprep.subr.mxu0 0.0
  %66 = vmatpush1.msra.mxu0 0.0
  %67 = vmatprep.subr.mxu0 0.0
  %68 = vmatpush1.msra.mxu0 0.0
  %69 = vmatprep.subr.mxu0 0.0
  %70 = vmatpush1.msra.mxu0 0.0
  %71 = vmatprep.subr.mxu0 0.0
  %72 = vmatpush1.msra.mxu0 0.0
  %73 = vmatprep.subr.mxu0 0.0
  %74 = vmatpush1.msra.mxu0 0.0
  %75 = vmatprep.subr.mxu0 0.0
  %76 = vmatpush1.msra.mxu0 0.0
  %77 = vmatprep.subr.mxu0 0.0
  %78 = vmatpush1.msra.mxu0 0.0
  %79 = vmatprep.subr.mxu0 0.0
  %80 = vmatpush1.msra.mxu0 0.0
  %81 = vmatprep.subr.mxu0 0.0
  %82 = vmatpush1.msra.mxu0 0.0
  %83 = vmatprep.subr.mxu0 0.0
  %84 = vmatpush1.msra.mxu0 0.0
  %85 = vmatprep.subr.mxu0 0.0
  %86 = vmatpush1.msra.mxu0 0.0
  %87 = vmatprep.subr.mxu0 0.0
  %88 = vmatpush1.msra.mxu0 0.0
  %89 = vmatprep.subr.mxu0 0.0
  %90 = vmatpush1.msra.mxu0 0.0
  %91 = vmatprep.subr.mxu0 0.0
  %92 = vmatpush1.msra.mxu0 0.0
  %93 = vmatprep.subr.mxu0 0.0
  %94 = vmatpush1.msra.mxu0 0.0
  %95 = vmatprep.subr.mxu0 0.0
  %96 = vmatpush1.msra.mxu0 0.0
  %97 = vmatprep.subr.mxu0 0.0
  %98 = vmatpush1.msra.mxu0 0.0
  %99 = vmatprep.subr.mxu0 0.0
  %100 = vmatpush1.msra.mxu0 0.0
  %101 = vmatprep.subr.mxu0 0.0
  %102 = vmatpush1.msra.mxu0 0.0
  %103 = vmatprep.mubr.f32.mxu0 0.0
  %104 = vmatmul.mubr.f32.gmra.mrb[0].mxu0 %v33
  %v105 = vpop.f32.mrb[0].mxu0
  %v106 = vadd.f32 0.0, %v105
  %v107 = vpop.f32.mrb[0].mxu0
  %108 = vdwg.mxu0
  %vm109 = vcmask 138240
  %v111 = vsel %vm109, %v18, 0
  %vm113 = vcmask 1040384
  %v115 = vsel %vm113, %v22, 0
  %117 = vmatprep.subr.mxu0 0.0
  %118 = vmatpush1.msra.mxu0 %v20
  %119 = vmatprep.subr.mxu0 0.0
  %120 = vmatpush1.msra.mxu0 %v21
  %121 = vmatprep.subr.mxu0 0.0
  %122 = vmatpush1.msra.mxu0 %v115
  %123 = vmatprep.subr.mxu0 0.0
  %124 = vmatpush1.msra.mxu0 0.0
  %125 = vmatprep.subr.mxu0 0.0
  %126 = vmatpush1.msra.mxu0 0.0
  %127 = vmatprep.subr.mxu0 0.0
  %128 = vmatpush1.msra.mxu0 0.0
  %129 = vmatprep.subr.mxu0 0.0
  %130 = vmatpush1.msra.mxu0 0.0
  %131 = vmatprep.subr.mxu0 0.0
  %132 = vmatpush1.msra.mxu0 0.0
  %133 = vmatprep.subr.mxu0 0.0
  %134 = vmatpush1.msra.mxu0 0.0
  %135 = vmatprep.subr.mxu0 0.0
  %136 = vmatpush1.msra.mxu0 0.0
  %137 = vmatprep.subr.mxu0 0.0
  %138 = vmatpush1.msra.mxu0 0.0
  %139 = vmatprep.subr.mxu0 0.0
  %140 = vmatpush1.msra.mxu0 0.0
  %141 = vmatprep.subr.mxu0 0.0
  %142 = vmatpush1.msra.mxu0 0.0
  %143 = vmatprep.subr.mxu0 0.0
  %144 = vmatpush1.msra.mxu0 0.0
  %145 = vmatprep.subr.mxu0 0.0
  %146 = vmatpush1.msra.mxu0 0.0
  %147 = vmatprep.subr.mxu0 0.0
  %148 = vmatpush1.msra.mxu0 0.0
  %149 = vmatprep.subr.mxu0 0.0
  %150 = vmatpush1.msra.mxu0 0.0
  %151 = vmatprep.subr.mxu0 0.0
  %152 = vmatpush1.msra.mxu0 0.0
  %153 = vmatprep.subr.mxu0 0.0
  %154 = vmatpush1.msra.mxu0 0.0
  %155 = vmatprep.subr.mxu0 0.0
  %156 = vmatpush1.msra.mxu0 0.0
  %157 = vmatprep.subr.mxu0 0.0
  %158 = vmatpush1.msra.mxu0 0.0
  %159 = vmatprep.subr.mxu0 0.0
  %160 = vmatpush1.msra.mxu0 0.0
  %161 = vmatprep.subr.mxu0 0.0
  %162 = vmatpush1.msra.mxu0 0.0
  %163 = vmatprep.subr.mxu0 0.0
  %164 = vmatpush1.msra.mxu0 0.0
  %165 = vmatprep.subr.mxu0 0.0
  %166 = vmatpush1.msra.mxu0 0.0
  %167 = vmatprep.subr.mxu0 0.0
  %168 = vmatpush1.msra.mxu0 0.0
  %169 = vmatprep.subr.mxu0 0.0
  %170 = vmatpush1.msra.mxu0 0.0
  %171 = vmatprep.subr.mxu0 0.0
  %172 = vmatpush1.msra.mxu0 0.0
  %173 = vmatprep.subr.mxu0 0.0
  %174 = vmatpush1.msra.mxu0 0.0
  %175 = vmatprep.subr.mxu0 0.0
  %176 = vmatpush1.msra.mxu0 0.0
  %177 = vmatprep.subr.mxu0 0.0
  %178 = vmatpush1.msra.mxu0 0.0
  %179 = vmatprep.subr.mxu0 0.0
  %180 = vmatpush1.msra.mxu0 0.0
  %181 = vmatprep.mubr.f32.mxu0 0.0
  %182 = vmatmul.mubr.f32.gmra.mrb[0].mxu0 %v111
  %v183 = vpop.f32.mrb[0].mxu0
  %v184 = vadd.f32 %v106, %v183
  %v185 = vpop.f32.mrb[0].mxu0
  %186 = vdwg.mxu0
  %v187 = vlaneseq
  %v188 = vshrl.u32 %v187, 7
  %v189 = vsub.s32 0, %v188
  %v190 = vrot.slane %v28, %v189
  %v191 = vadd.f32 %v184, %v190
  %v192 = vmax.f32 %v191, 0.0
  %v193 = vlaneseq
  %v194 = vshrl.u32 %v193, 7
  %v195 = vsub.s32 0, %v194
  %v196 = vrot.slane %v29, %v195
  %vm197 = vcmask 261120
  %v199 = vsel %vm197, %v192, 0
  %201 = vmatprep.subr.mxu0 0.0
  %202 = vmatpush1.msra.mxu0 %v24
  %203 = vmatprep.subr.mxu0 0.0
  %204 = vmatpush1.msra.mxu0 %v25
  %205 = vmatprep.subr.mxu0 0.0
  %206 = vmatpush1.msra.mxu0 %v26
  %207 = vmatprep.subr.mxu0 0.0
  %208 = vmatpush1.msra.mxu0 %v27
  %209 = vmatprep.subr.mxu0 0.0
  %210 = vmatpush1.msra.mxu0 0.0
  %211 = vmatprep.subr.mxu0 0.0
  %212 = vmatpush1.msra.mxu0 0.0
  %213 = vmatprep.subr.mxu0 0.0
  %214 = vmatpush1.msra.mxu0 0.0
  %215 = vmatprep.subr.mxu0 0.0
  %216 = vmatpush1.msra.mxu0 0.0
  %217 = vmatprep.subr.mxu0 0.0
  %218 = vmatpush1.msra.mxu0 0.0
  %219 = vmatprep.subr.mxu0 0.0
  %220 = vmatpush1.msra.mxu0 0.0
  %221 = vmatprep.subr.mxu0 0.0
  %222 = vmatpush1.msra.mxu0 0.0
  %223 = vmatprep.subr.mxu0 0.0
  %224 = vmatpush1.msra.mxu0 0.0
  %225 = vmatprep.subr.mxu0 0.0
  %226 = vmatpush1.msra.mxu0 0.0
  %227 = vmatprep.subr.mxu0 0.0
  %228 = vmatpush1.msra.mxu0 0.0
  %229 = vmatprep.subr.mxu0 0.0
  %230 = vmatpush1.msra.mxu0 0.0
  %231 = vmatprep.subr.mxu0 0.0
  %232 = vmatpush1.msra.mxu0 0.0
  %233 = vmatprep.subr.mxu0 0.0
  %234 = vmatpush1.msra.mxu0 0.0
  %235 = vmatprep.subr.mxu0 0.0
  %236 = vmatpush1.msra.mxu0 0.0
  %237 = vmatprep.subr.mxu0 0.0
  %238 = vmatpush1.msra.mxu0 0.0
  %239 = vmatprep.subr.mxu0 0.0
  %240 = vmatpush1.msra.mxu0 0.0
  %241 = vmatprep.subr.mxu0 0.0
  %242 = vmatpush1.msra.mxu0 0.0
  %243 = vmatprep.subr.mxu0 0.0
  %244 = vmatpush1.msra.mxu0 0.0
  %245 = vmatprep.subr.mxu0 0.0
  %246 = vmatpush1.msra.mxu0 0.0
  %247 = vmatprep.subr.mxu0 0.0
  %248 = vmatpush1.msra.mxu0 0.0
  %249 = vmatprep.subr.mxu0 0.0
  %250 = vmatpush1.msra.mxu0 0.0
  %251 = vmatprep.subr.mxu0 0.0
  %252 = vmatpush1.msra.mxu0 0.0
  %253 = vmatprep.subr.mxu0 0.0
  %254 = vmatpush1.msra.mxu0 0.0
  %255 = vmatprep.subr.mxu0 0.0
  %256 = vmatpush1.msra.mxu0 0.0
  %257 = vmatprep.subr.mxu0 0.0
  %258 = vmatpush1.msra.mxu0 0.0
  %259 = vmatprep.subr.mxu0 0.0
  %260 = vmatpush1.msra.mxu0 0.0
  %261 = vmatprep.subr.mxu0 0.0
  %262 = vmatpush1.msra.mxu0 0.0
  %263 = vmatprep.subr.mxu0 0.0
  %264 = vmatpush1.msra.mxu0 0.0
  %265 = vmatprep.mubr.f32.mxu0 0.0
  %266 = vmatmul.mubr.f32.gmra.mrb[0].mxu0 %v199
  %v267 = vpop.f32.mrb[0].mxu0
  %v268 = vadd.f32 %v196, %v267
  %v269 = vpop.f32.mrb[0].mxu0
  %270 = vdwg.mxu0
  %v271 = vmax.f32 %v268, 0.0
  %v272 = vlaneseq
  %v273 = vshrl.u32 %v272, 7
  %v274 = vsub.s32 0, %v273
  %v275 = vrot.slane %v30, %v274
  %v276 = vmul.f32 %v271, %v275
  %v277 = vsel %vm197, %v276, 0.0
  %278 = vadd.xlane.f32.xlu0 %v277
  %v279 = vpop.xlane.xlu0 %278
  %s280 = sld [smem:[#allocation2]]
  %v281 = vstv %s280
  %v282 = vadd.f32 %v279, %v281
  %vm283 = vcmask 7168
  %284 = vst.msk [vmem:[%s4] sm:$0xff] %vm283, %v282
  // Predicated region
  $region18: #{tpu_custom_call.1} parent=0 // pred_check
    _
  $region19: #{tpu_custom_call.1} parent=0 // pred_check_branch
    %286 = sbr.rel (0) target = $region21
  $region20: #{tpu_custom_call.1} parent=0 // pred_region
    _
  $region21: #{tpu_custom_call.1} parent=0 // pred_fallthru
    _
  // Predicated region
  $region22: #{tpu_custom_call.1} parent=0 // pred_check
    _
  $region23: #{tpu_custom_call.1} parent=0 // pred_check_branch
    %288 = sbr.rel (0) target = $region25
  $region24: #{tpu_custom_call.1} parent=0 // pred_region
    _
  $region25: #{tpu_custom_call.1} parent=0 // pred_fallthru
    _

</llo_original>
